<compile_context>
chip_gen: v5e
topology: v5e:2x2
jax: 0.10.0
libtpu: 0.0.40
codegen_flags: <defaults>
</compile_context>

<pallas_src>
import functools

import jax
import jax.numpy as jnp
from jax.experimental import pallas as pl
from jax.experimental.pallas import tpu as pltpu

NEG_SLOPE = 0.01          # nn.LeakyReLU default
H1, H2, H3 = 256, 128, 128
LANE = 128
SUBLANE = 8
MIN_STEPS = 4             # target grid steps so megacore (v7x) can split batch


def _round_up(x, m):
    return (x + m - 1) // m * m


def _cdiv(a, b):
    return -(-a // b)


def _leaky_relu(x):
    # mul + max on the VPU (no compare/select); VPU is not the bottleneck.
    return jnp.maximum(x, NEG_SLOPE * x)


def mlp_kernel(x_ref, w1_ref, w2_ref, w3_ref, w4_ref, b_ref,
               share_ref, logits_ref):
    h1 = w1_ref.shape[1]
    h2 = w2_ref.shape[1]
    h3 = w3_ref.shape[1]
    n_out = w4_ref.shape[1]

    x = x_ref[...]
    cdt = x.dtype                       # compute dtype for MXU operands
    b = b_ref[...]                      # (4, W) packed biases, f32
    b1 = b[0:1, :h1]
    b2 = b[1:2, :h2]
    b3 = b[2:3, :h3]
    b4 = b[3:4, :n_out]

    # Linear(in, 256) + LeakyReLU   (accumulate in f32, elementwise in f32)
    h = _leaky_relu(
        jnp.dot(x, w1_ref[...], preferred_element_type=jnp.float32) + b1)
    # Linear(256, 128) + LeakyReLU  -> self.share
    share = _leaky_relu(
        jnp.dot(h.astype(cdt), w2_ref[...],
                preferred_element_type=jnp.float32) + b2)
    share_ref[...] = share.astype(share_ref.dtype)

    # Linear(128, 128) + LeakyReLU
    g = _leaky_relu(
        jnp.dot(share.astype(cdt), w3_ref[...],
                preferred_element_type=jnp.float32) + b3)
    # Linear(128, n_actions) (lane-padded to 128; padded cols are exactly 0)
    # TODO(synk): if profiling shows MXU-pass-bound f32 on v5e, split the tile
    # in two and interleave the two independent layer chains.
    logits_ref[...] = (
        jnp.dot(g.astype(cdt), w4_ref[...],
                preferred_element_type=jnp.float32) + b4
    ).astype(logits_ref.dtype)


def prepare_params(params, *, compute_dtype=jnp.float32):
    """One-time weight preparation (call ONCE, not per forward).

    Casts weights to `compute_dtype` (bf16 recommended for MXU-bound /
    memory-bound use on v5e/v6e/v7x alike - accumulation stays f32 in-kernel),
    lane-pads w4 to a multiple of 128 so logits stores are lane-dense, and
    packs the 4 biases into one (4, W) f32 block.
    Weights are (in, out) so the kernel computes x @ W + b.
    """
    cdt = compute_dtype
    w1 = params["w1"].astype(cdt)                    # (in_dim, H1)
    w2 = params["w2"].astype(cdt)                    # (H1, H2)
    w3 = params["w3"].astype(cdt)                    # (H2, H3)
    h1 = w1.shape[1]
    h2 = w2.shape[1]
    h3 = w3.shape[1]
    n_act = params["w4"].shape[1]
    n_pad = _round_up(max(n_act, LANE), LANE)
    w4 = jnp.zeros((h3, n_pad), cdt).at[:, :n_act].set(
        params["w4"].astype(cdt))

    bw = max(h1, n_pad)
    bp = jnp.zeros((4, bw), jnp.float32)
    bp = bp.at[0, :h1].set(params["b1"].reshape(-1).astype(jnp.float32))
    bp = bp.at[1, :h2].set(params["b2"].reshape(-1).astype(jnp.float32))
    bp = bp.at[2, :h3].set(params["b3"].reshape(-1).astype(jnp.float32))
    bp = bp.at[3, :n_act].set(params["b4"].reshape(-1).astype(jnp.float32))
    return dict(w1=w1, w2=w2, w3=w3, w4=w4, bias=bp)


def fc_forward(x, w, *, n_act, batch_tile=1024, out_dtype=jnp.float32):
    """Pallas implementation of Module.forward.

    `w` is the output of `prepare_params`.  Returns
    (dict(discrete=[logits]), share) - `share` mirrors `self.share`.
    Use prepare_params(compute_dtype=bf16) and/or out_dtype=bf16 to cut HBM
    traffic in the memory-bound regime (accumulation stays f32).
    """
    B, in_dim = x.shape
    w1, w2, w3, w4, bp = w["w1"], w["w2"], w["w3"], w["w4"], w["bias"]
    h1 = w1.shape[1]
    h2 = w2.shape[1]
    h3 = w3.shape[1]
    n_pad = w4.shape[1]
    bw = bp.shape[1]
    cdt = w1.dtype

    # ---- adaptive batch tiling -------------------------------------------
    # Aim for >= MIN_STEPS grid steps (so "parallel" can shard the batch axis
    # across v7x's 2 TensorCores) without exceeding batch_tile rows per step;
    # padding waste is bounded by < tb rows (vs. up to 511 before).
    batch_tile = max(SUBLANE, _round_up(batch_tile, SUBLANE))
    n_steps = max(_cdiv(B, batch_tile), min(MIN_STEPS, _cdiv(B, SUBLANE)))
    tb = _round_up(_cdiv(B, n_steps), SUBLANE)
    b_pad = _round_up(B, tb)

    # Feed x directly (no K padding, no HBM round-trip); only pad the batch
    # dim when B is not already a multiple of tb.
    xc = x.astype(cdt)
    if b_pad != B:
        xc = jnp.pad(xc, ((0, b_pad - B), (0, 0)))

    resident = lambda shape: pl.BlockSpec(shape, lambda i: (0, 0))

    share_p, logits_p = pl.pallas_call(
        mlp_kernel,
        out_shape=(
            jax.ShapeDtypeStruct((b_pad, h2), out_dtype),
            jax.ShapeDtypeStruct((b_pad, n_pad), out_dtype),
        ),
        grid_spec=pltpu.PrefetchScalarGridSpec(
            num_scalar_prefetch=0,
            grid=(b_pad // tb,),
            in_specs=[
                # x batch tile: last dim == full array dim (legal even < 128)
                pl.BlockSpec((tb, in_dim), lambda i: (i, 0)),
                resident((in_dim, h1)),                 # w1 (resident)
                resident((h1, h2)),                     # w2
                resident((h2, h3)),                     # w3
                resident((h3, n_pad)),                  # w4 (lane-padded)
                resident((4, bw)),                      # packed biases
            ],
            out_specs=[
                pl.BlockSpec((tb, h2), lambda i: (i, 0)),     # share
                pl.BlockSpec((tb, n_pad), lambda i: (i, 0)),  # logits (padded)
            ],
        ),
        compiler_params=pltpu.CompilerParams(
            dimension_semantics=("parallel",),   # shard batch over TCs (v7x)
            vmem_limit_bytes=32 * 1024 * 1024,   # ample headroom up to tb=2048
        ),
    )(xc, w1, w2, w3, w4, bp)

    share = share_p[:B]
    logits = logits_p[:B, :n_act]
    return dict(discrete=[logits]), share


def init_params(key, in_dim, n_actions):
    """Deterministic synthetic parameters with the shapes implied by __init__.

    Weights are stored transposed relative to PyTorch, i.e. (in, out), so the
    kernel computes x @ W + b.
    """
    dims = [(in_dim, H1), (H1, H2), (H2, H3), (H3, n_actions)]
    params = {}
    for i, (din, dout) in enumerate(dims, start=1):
        key, kw, kb = jax.random.split(key, 3)
        scale = 1.0 / jnp.sqrt(jnp.float32(din))
        params[f"w{i}"] = jax.random.uniform(kw, (din, dout), jnp.float32,
                                             minval=-scale, maxval=scale)
        params[f"b{i}"] = jax.random.uniform(kb, (dout,), jnp.float32,
                                             minval=-scale, maxval=scale)
    return params


def reference_forward(x, params):
    def lin(h, w, b):
        return h @ w + b
    h = jax.nn.leaky_relu(lin(x, params["w1"], params["b1"]), NEG_SLOPE)
    share = jax.nn.leaky_relu(lin(h, params["w2"], params["b2"]), NEG_SLOPE)
    g = jax.nn.leaky_relu(lin(share, params["w3"], params["b3"]), NEG_SLOPE)
    return lin(g, params["w4"], params["b4"]), share


if __name__ == "__main__":
    key = jax.random.PRNGKey(0)
    batch, in_dim, n_actions = 8, 32, 6   # small flat-observation example

    kx, kp = jax.random.split(key)
    x = jax.random.normal(kx, (batch, in_dim), jnp.float32)
    params = init_params(kp, in_dim, n_actions)

    # One-time weight prep (hoisted out of the per-call path).
    prepped = prepare_params(params, compute_dtype=jnp.float32)

    fwd = jax.jit(functools.partial(fc_forward, n_act=n_actions))
    out, share = fwd(x, prepped)
    logits = out["discrete"][0]
    jax.block_until_ready(logits)

    ref_logits, ref_share = reference_forward(x, params)
    assert logits.shape == (batch, n_actions)
    assert share.shape == (batch, H2)
    assert jnp.allclose(logits, ref_logits, atol=1e-4, rtol=1e-4)
    assert jnp.allclose(share, ref_share, atol=1e-4, rtol=1e-4)

    print("KERNEL_OK")
</pallas_src>

<mosaic_0001>
module attributes {stable_mosaic.version = 11 : i64} {
  func.func @mlp_kernel(%arg0: i32, %arg1: memref<8x32xf32, #tpu.memory_space<vmem>>, %arg2: memref<32x256xf32, #tpu.memory_space<vmem>>, %arg3: memref<256x128xf32, #tpu.memory_space<vmem>>, %arg4: memref<128x128xf32, #tpu.memory_space<vmem>>, %arg5: memref<128x128xf32, #tpu.memory_space<vmem>>, %arg6: memref<4x256xf32, #tpu.memory_space<vmem>>, %arg7: memref<8x128xf32, #tpu.memory_space<vmem>>, %arg8: memref<8x128xf32, #tpu.memory_space<vmem>>) attributes {dimension_semantics = [#tpu.dimension_semantics<parallel>], iteration_bounds = array<i64: 1>, scalar_prefetch = 0 : i64, scratch_operands = 0 : i64, tpu.core_type = #tpu.core_type<tc>, window_params = [{transform_indices = @transform_0, window_bounds = array<i64: 8, 32>}, {pipeline_mode = #tpu.pipeline_mode<synchronous>, transform_indices = @transform_1, window_bounds = array<i64: 32, 256>}, {pipeline_mode = #tpu.pipeline_mode<synchronous>, transform_indices = @transform_2, window_bounds = array<i64: 256, 128>}, {pipeline_mode = #tpu.pipeline_mode<synchronous>, transform_indices = @transform_3, window_bounds = array<i64: 128, 128>}, {pipeline_mode = #tpu.pipeline_mode<synchronous>, transform_indices = @transform_4, window_bounds = array<i64: 128, 128>}, {pipeline_mode = #tpu.pipeline_mode<synchronous>, transform_indices = @transform_5, window_bounds = array<i64: 4, 256>}, {transform_indices = @transform_6, window_bounds = array<i64: 8, 128>}, {transform_indices = @transform_7, window_bounds = array<i64: 8, 128>}]} {
    %c0 = arith.constant 0 : index
    %c0_0 = arith.constant 0 : index
    %0 = vector.load %arg1[%c0, %c0_0] : memref<8x32xf32, #tpu.memory_space<vmem>>, vector<8x32xf32>
    %c0_1 = arith.constant 0 : index
    %c0_2 = arith.constant 0 : index
    %1 = vector.load %arg6[%c0_1, %c0_2] : memref<4x256xf32, #tpu.memory_space<vmem>>, vector<4x256xf32>
    %2 = vector.extract_strided_slice %1 {offsets = [0, 0], sizes = [1, 256], strides = [1, 1]} : vector<4x256xf32> to vector<1x256xf32>
    %3 = vector.extract_strided_slice %1 {offsets = [1, 0], sizes = [1, 128], strides = [1, 1]} : vector<4x256xf32> to vector<1x128xf32>
    %4 = vector.extract_strided_slice %1 {offsets = [2, 0], sizes = [1, 128], strides = [1, 1]} : vector<4x256xf32> to vector<1x128xf32>
    %5 = vector.extract_strided_slice %1 {offsets = [3, 0], sizes = [1, 128], strides = [1, 1]} : vector<4x256xf32> to vector<1x128xf32>
    %c0_3 = arith.constant 0 : index
    %c0_4 = arith.constant 0 : index
    %6 = vector.load %arg2[%c0_3, %c0_4] : memref<32x256xf32, #tpu.memory_space<vmem>>, vector<32x256xf32>
    %cst = arith.constant dense<0.000000e+00> : vector<8x256xf32>
    %7 = tpu.matmul %0, %6, %cst {dimension_numbers = #tpu.dot_dimension_numbers<[1], [0], [0], [1], [0, 0, 1, 1], [], []>} : vector<8x32xf32>, vector<32x256xf32>, vector<8x256xf32> -> vector<8x256xf32>
    %8 = vector.broadcast %2 : vector<1x256xf32> to vector<8x256xf32>
    %9 = arith.addf %7, %8 : vector<8x256xf32>
    %cst_5 = arith.constant 0.00999999977 : f32
    %10 = vector.broadcast %cst_5 : f32 to vector<8x256xf32>
    %11 = arith.mulf %10, %9 : vector<8x256xf32>
    %12 = arith.maximumf %9, %11 : vector<8x256xf32>
    %c0_6 = arith.constant 0 : index
    %c0_7 = arith.constant 0 : index
    %13 = vector.load %arg3[%c0_6, %c0_7] : memref<256x128xf32, #tpu.memory_space<vmem>>, vector<256x128xf32>
    %cst_8 = arith.constant dense<0.000000e+00> : vector<8x128xf32>
    %14 = tpu.matmul %12, %13, %cst_8 {dimension_numbers = #tpu.dot_dimension_numbers<[1], [0], [0], [1], [0, 0, 1, 1], [], []>} : vector<8x256xf32>, vector<256x128xf32>, vector<8x128xf32> -> vector<8x128xf32>
    %15 = vector.broadcast %3 : vector<1x128xf32> to vector<8x128xf32>
    %16 = arith.addf %14, %15 : vector<8x128xf32>
    %cst_9 = arith.constant 0.00999999977 : f32
    %17 = vector.broadcast %cst_9 : f32 to vector<8x128xf32>
    %18 = arith.mulf %17, %16 : vector<8x128xf32>
    %19 = arith.maximumf %16, %18 : vector<8x128xf32>
    %c0_10 = arith.constant 0 : index
    %c0_11 = arith.constant 0 : index
    %20 = vector.load %arg7[%c0_10, %c0_11] : memref<8x128xf32, #tpu.memory_space<vmem>>, vector<8x128xf32>
    tpu.vector_store %arg7[%c0_10, %c0_11], %19 {strides = array<i32>} : memref<8x128xf32, #tpu.memory_space<vmem>>, vector<8x128xf32>,
    %c0_12 = arith.constant 0 : index
    %c0_13 = arith.constant 0 : index
    %21 = vector.load %arg4[%c0_12, %c0_13] : memref<128x128xf32, #tpu.memory_space<vmem>>, vector<128x128xf32>
    %cst_14 = arith.constant dense<0.000000e+00> : vector<8x128xf32>
    %22 = tpu.matmul %19, %21, %cst_14 {dimension_numbers = #tpu.dot_dimension_numbers<[1], [0], [0], [1], [0, 0, 1, 1], [], []>} : vector<8x128xf32>, vector<128x128xf32>, vector<8x128xf32> -> vector<8x128xf32>
    %23 = vector.broadcast %4 : vector<1x128xf32> to vector<8x128xf32>
    %24 = arith.addf %22, %23 : vector<8x128xf32>
    %cst_15 = arith.constant 0.00999999977 : f32
    %25 = vector.broadcast %cst_15 : f32 to vector<8x128xf32>
    %26 = arith.mulf %25, %24 : vector<8x128xf32>
    %27 = arith.maximumf %24, %26 : vector<8x128xf32>
    %c0_16 = arith.constant 0 : index
    %c0_17 = arith.constant 0 : index
    %28 = vector.load %arg5[%c0_16, %c0_17] : memref<128x128xf32, #tpu.memory_space<vmem>>, vector<128x128xf32>
    %cst_18 = arith.constant dense<0.000000e+00> : vector<8x128xf32>
    %29 = tpu.matmul %27, %28, %cst_18 {dimension_numbers = #tpu.dot_dimension_numbers<[1], [0], [0], [1], [0, 0, 1, 1], [], []>} : vector<8x128xf32>, vector<128x128xf32>, vector<8x128xf32> -> vector<8x128xf32>
    %30 = vector.broadcast %5 : vector<1x128xf32> to vector<8x128xf32>
    %31 = arith.addf %29, %30 : vector<8x128xf32>
    %c0_19 = arith.constant 0 : index
    %c0_20 = arith.constant 0 : index
    %32 = vector.load %arg8[%c0_19, %c0_20] : memref<8x128xf32, #tpu.memory_space<vmem>>, vector<8x128xf32>
    tpu.vector_store %arg8[%c0_19, %c0_20], %31 {strides = array<i32>} : memref<8x128xf32, #tpu.memory_space<vmem>>, vector<8x128xf32>,
    return
  }
  func.func @transform_0(%arg0: i32) -> (i32, i32) {
    %c0_i32 = arith.constant 0 : i32
    %c0_i32_0 = arith.constant 0 : i32
    return %arg0, %c0_i32 : i32, i32
  }
  func.func @transform_1(%arg0: i32) -> (i32, i32) {
    %c0_i32 = arith.constant 0 : i32
    %c0_i32_0 = arith.constant 0 : i32
    %c0_i32_1 = arith.constant 0 : i32
    return %c0_i32, %c0_i32_0 : i32, i32
  }
  func.func @transform_2(%arg0: i32) -> (i32, i32) {
    %c0_i32 = arith.constant 0 : i32
    %c0_i32_0 = arith.constant 0 : i32
    %c0_i32_1 = arith.constant 0 : i32
    return %c0_i32, %c0_i32_0 : i32, i32
  }
  func.func @transform_3(%arg0: i32) -> (i32, i32) {
    %c0_i32 = arith.constant 0 : i32
    %c0_i32_0 = arith.constant 0 : i32
    %c0_i32_1 = arith.constant 0 : i32
    return %c0_i32, %c0_i32_0 : i32, i32
  }
  func.func @transform_4(%arg0: i32) -> (i32, i32) {
    %c0_i32 = arith.constant 0 : i32
    %c0_i32_0 = arith.constant 0 : i32
    %c0_i32_1 = arith.constant 0 : i32
    return %c0_i32, %c0_i32_0 : i32, i32
  }
  func.func @transform_5(%arg0: i32) -> (i32, i32) {
    %c0_i32 = arith.constant 0 : i32
    %c0_i32_0 = arith.constant 0 : i32
    %c0_i32_1 = arith.constant 0 : i32
    return %c0_i32, %c0_i32_0 : i32, i32
  }
  func.func @transform_6(%arg0: i32) -> (i32, i32) {
    %c0_i32 = arith.constant 0 : i32
    %c0_i32_0 = arith.constant 0 : i32
    return %arg0, %c0_i32 : i32, i32
  }
  func.func @transform_7(%arg0: i32) -> (i32, i32) {
    %c0_i32 = arith.constant 0 : i32
    %c0_i32_0 = arith.constant 0 : i32
    return %arg0, %c0_i32 : i32, i32
  }
}

</mosaic_0001>

<llo_original>
// kernel: fc_forward.1
$region0: #{fc_forward.1}
  #allocation0 [shape = 'u32[]', space=smem, size = 0x4, offset = 0x4, fixed_abs, tag = 'smem constant byte address 0x4 - core index']
  #allocation1 [shape = 'u32[72,128]{1,0:T(1,128)}', space=vmem, size = 0x9000, scoped, tag = 'internal scratch']
  %s0 = inlined_call_operand.hbm [shape: f32[8,32], index: 0, kind: input, shape index: {}]
  %s1 = inlined_call_operand.hbm [shape: f32[32,256], index: 1, kind: input, shape index: {}]
  %s2 = inlined_call_operand.hbm [shape: f32[256,128], index: 2, kind: input, shape index: {}]
  %s3 = inlined_call_operand.hbm [shape: f32[128,128], index: 3, kind: input, shape index: {}]
  %s4 = inlined_call_operand.hbm [shape: f32[128,128], index: 4, kind: input, shape index: {}]
  %s5 = inlined_call_operand.hbm [shape: f32[4,256], index: 5, kind: input, shape index: {}]
  %s6 = inlined_call_operand.hbm [shape: f32[8,128], index: 6, kind: output, shape index: {0}]
  %s7 = inlined_call_operand.hbm [shape: f32[8,128], index: 7, kind: output, shape index: {1}]
  %8 = xla_tuple %s6, %s7
  %s9 = sld [smem:[#allocation0]]
  $region66: #{fc_forward.1} parent=0
    _
  %s11 = ssub.s32 1, %s9
  %s12 = scalar_select 0, %s11, %s9
  $region1: #{fc_forward.1} parent=0
    #allocation2 [shape = 'u8[4096]{0}', space=vmem, size = 0x1000, scoped, tag = 'input window, operand 0, single buffered']
    #allocation3 [shape = 's32[1]{0}', space=sflag, size = 0x4, scoped, tag = 'scoped memory for fc_forward.1']
    #allocation4 [shape = 's32[1]{0}', space=sflag, size = 0x4, scoped, tag = 'scoped memory for fc_forward.1']
    #allocation5 [shape = 'u8[32768]{0}', space=vmem, size = 0x8000, scoped, tag = 'input window, operand 1, single buffered']
    #allocation6 [shape = 's32[1]{0}', space=sflag, size = 0x4, scoped, tag = 'scoped memory for fc_forward.1']
    #allocation7 [shape = 'u8[131072]{0}', space=vmem, size = 0x20000, scoped, tag = 'input window, operand 2, single buffered']
    #allocation8 [shape = 'u8[65536]{0}', space=vmem, size = 0x10000, scoped, tag = 'input window, operand 3, single buffered']
    #allocation9 [shape = 's32[1]{0}', space=sflag, size = 0x4, scoped, tag = 'scoped memory for fc_forward.1']
    #allocation10 [shape = 'u8[65536]{0}', space=vmem, size = 0x10000, scoped, tag = 'input window, operand 4, single buffered']
    #allocation11 [shape = 'u8[4096]{0}', space=vmem, size = 0x1000, scoped, tag = 'input window, operand 5, single buffered']
    #allocation12 [shape = 's32[1]{0}', space=sflag, size = 0x4, scoped, tag = 'scoped memory for fc_forward.1']
    #allocation13 [shape = 'u8[4096]{0}', space=vmem, size = 0x1000, scoped, tag = 'output window, operand 0, single buffered']
    #allocation14 [shape = 'u8[4096]{0}', space=vmem, size = 0x1000, scoped, tag = 'output window, operand 1, single buffered']
    #allocation15 [shape = 's32[1]{0}', space=sflag, size = 0x4, scoped, tag = 'scoped memory for fc_forward.1']
    %13 = vsyncpa [#allocation3], 0
    %14 = vsyncpa [#allocation6], 0
    %15 = vsyncpa [#allocation9], 0
    %16 = vsyncpa [#allocation12], 0
    %17 = vsyncpa [#allocation4], 0
    %18 = vsyncpa [#allocation15], 0
    // Predicated region
    $region2: #{fc_forward.1} parent=1 // pred_check
      _
    $region3: #{fc_forward.1} parent=1 // pred_check_branch
      %20 = sbr.rel (0) target = $region5
    $region4: #{fc_forward.1} parent=1 // pred_region
      %22 = vsyncadd [#allocation3], 0
      %s24 = sshll.u32 %s0, 4
      %s25 = int_to_ptr.hbm [resolvable:$true] %s24
      %s26 = sshll.u32 [#allocation2], 4
      %s27 = int_to_ptr.vmem [resolvable:$true] %s26
      %29 = dma.hbm_to_vmem [thread:$0]  %s25, 128, %s27, [#allocation3]
    $region5: #{fc_forward.1} parent=1 // pred_fallthru
      _
    // Predicated region
    $region6: #{fc_forward.1} parent=1 // pred_check
      _
    $region7: #{fc_forward.1} parent=1 // pred_check_branch
      %31 = sbr.rel (0) target = $region9
    $region8: #{fc_forward.1} parent=1 // pred_region
      %33 = vsyncadd [#allocation6], 0
      %s34 = sshll.u32 %s1, 4
      %s35 = int_to_ptr.hbm [resolvable:$true] %s34
      %s36 = sshll.u32 [#allocation5], 4
      %s37 = int_to_ptr.vmem [resolvable:$true] %s36
      %42 = dma.hbm_to_vmem [thread:$0]  %s35, 1024, %s37, [#allocation6], 256, 256, 16
    $region9: #{fc_forward.1} parent=1 // pred_fallthru
      _
    // Predicated region
    $region10: #{fc_forward.1} parent=1 // pred_check
      _
    $region11: #{fc_forward.1} parent=1 // pred_check_branch
      %44 = sbr.rel (0) target = $region13
    $region12: #{fc_forward.1} parent=1 // pred_region
      %46 = vsyncadd [#allocation6], 0
      %s47 = sshll.u32 %s2, 4
      %s48 = int_to_ptr.hbm [resolvable:$true] %s47
      %s49 = sshll.u32 [#allocation7], 4
      %s50 = int_to_ptr.vmem [resolvable:$true] %s49
      %55 = dma.hbm_to_vmem [thread:$0]  %s48, 4096, %s50, [#allocation6], 128, 128, 8
    $region13: #{fc_forward.1} parent=1 // pred_fallthru
      _
    // Predicated region
    $region14: #{fc_forward.1} parent=1 // pred_check
      _
    $region15: #{fc_forward.1} parent=1 // pred_check_branch
      %57 = sbr.rel (0) target = $region17
    $region16: #{fc_forward.1} parent=1 // pred_region
      %59 = vsyncadd [#allocation9], 0
      %s60 = sshll.u32 %s3, 4
      %s61 = int_to_ptr.hbm [resolvable:$true] %s60
      %s62 = sshll.u32 [#allocation8], 4
      %s63 = int_to_ptr.vmem [resolvable:$true] %s62
      %68 = dma.hbm_to_vmem [thread:$0]  %s61, 2048, %s63, [#allocation9], 128, 128, 8
    $region17: #{fc_forward.1} parent=1 // pred_fallthru
      _
    // Predicated region
    $region18: #{fc_forward.1} parent=1 // pred_check
      _
    $region19: #{fc_forward.1} parent=1 // pred_check_branch
      %70 = sbr.rel (0) target = $region21
    $region20: #{fc_forward.1} parent=1 // pred_region
      %72 = vsyncadd [#allocation9], 0
      %s73 = sshll.u32 %s4, 4
      %s74 = int_to_ptr.hbm [resolvable:$true] %s73
      %s75 = sshll.u32 [#allocation10], 4
      %s76 = int_to_ptr.vmem [resolvable:$true] %s75
      %81 = dma.hbm_to_vmem [thread:$0]  %s74, 2048, %s76, [#allocation9], 128, 128, 8
    $region21: #{fc_forward.1} parent=1 // pred_fallthru
      _
    // Predicated region
    $region22: #{fc_forward.1} parent=1 // pred_check
      _
    $region23: #{fc_forward.1} parent=1 // pred_check_branch
      %83 = sbr.rel (0) target = $region25
    $region24: #{fc_forward.1} parent=1 // pred_region
      %85 = vsyncadd [#allocation12], 0
      %s87 = sshll.u32 %s5, 4
      %s88 = int_to_ptr.hbm [resolvable:$true] %s87
      %s89 = sshll.u32 [#allocation11], 4
      %s90 = int_to_ptr.vmem [resolvable:$true] %s89
      %92 = dma.hbm_to_vmem [thread:$0]  %s88, 128, %s90, [#allocation12]
    $region25: #{fc_forward.1} parent=1 // pred_fallthru
      _
    // Predicated region
    $region26: #{fc_forward.1} parent=1 // pred_check
      _
    $region27: #{fc_forward.1} parent=1 // pred_check_branch
      %94 = sbr.rel (0) target = $region29
    $region28: #{fc_forward.1} parent=1 // pred_region
      %96 = dma.done [#allocation3], 128
    $region29: #{fc_forward.1} parent=1 // pred_fallthru
      _
    // Predicated region
    $region30: #{fc_forward.1} parent=1 // pred_check
      _
    $region31: #{fc_forward.1} parent=1 // pred_check_branch
      %98 = sbr.rel (0) target = $region33
    $region32: #{fc_forward.1} parent=1 // pred_region
      %100 = dma.done [#allocation6], 1024
    $region33: #{fc_forward.1} parent=1 // pred_fallthru
      _
    // Predicated region
    $region34: #{fc_forward.1} parent=1 // pred_check
      _
    $region35: #{fc_forward.1} parent=1 // pred_check_branch
      %102 = sbr.rel (0) target = $region37
    $region36: #{fc_forward.1} parent=1 // pred_region
      %104 = dma.done [#allocation6], 4096
    $region37: #{fc_forward.1} parent=1 // pred_fallthru
      _
    // Predicated region
    $region38: #{fc_forward.1} parent=1 // pred_check
      _
    $region39: #{fc_forward.1} parent=1 // pred_check_branch
      %106 = sbr.rel (0) target = $region41
    $region40: #{fc_forward.1} parent=1 // pred_region
      %108 = dma.done [#allocation9], 2048
    $region41: #{fc_forward.1} parent=1 // pred_fallthru
      _
    // Predicated region
    $region42: #{fc_forward.1} parent=1 // pred_check
      _
    $region43: #{fc_forward.1} parent=1 // pred_check_branch
      %110 = sbr.rel (0) target = $region45
    $region44: #{fc_forward.1} parent=1 // pred_region
      %112 = dma.done [#allocation9], 2048
    $region45: #{fc_forward.1} parent=1 // pred_fallthru
      _
    // Predicated region
    $region46: #{fc_forward.1} parent=1 // pred_check
      _
    $region47: #{fc_forward.1} parent=1 // pred_check_branch
      %114 = sbr.rel (0) target = $region49
    $region48: #{fc_forward.1} parent=1 // pred_region
      %116 = dma.done [#allocation12], 128
    $region49: #{fc_forward.1} parent=1 // pred_fallthru
      _
    %v117 = vld [vmem:[#allocation2] sm:$0xff]
    %v118 = vld [vmem:[#allocation11] sm:$0xff]
    %v119 = vld [vmem:[#allocation5] sm:$0xff]
    %v120 = vld [vmem:[#allocation5 + $0x8] sm:$0xff]
    %v121 = vld [vmem:[#allocation5 + $0x10] sm:$0xff]
    %v122 = vld [vmem:[#allocation5 + $0x18] sm:$0xff]
    %v123 = vld [vmem:[#allocation5 + $0x20] sm:$0xff]
    %v124 = vld [vmem:[#allocation5 + $0x28] sm:$0xff]
    %v125 = vld [vmem:[#allocation5 + $0x30] sm:$0xff]
    %v126 = vld [vmem:[#allocation5 + $0x38] sm:$0xff]
    %v128 = vperm.slane %v118, 0
    %v129 = vperm.slane %v118, 4
    %v132 = vperm.slane %v128, 0
    %v133 = vperm.slane %v129, 0
    %vm134 = vcmask 261120
    %v136 = vsel %vm134, %v117, 0
    %138 = vmatpush.msra.mxu0 0.0
    %139 = vmatpush.msra.mxu0 0.0
    %140 = vmatpush.msra.mxu0 0.0
    %141 = vmatpush.msra.mxu0 0.0
    %142 = vmatpush.msra.mxu0 0.0
    %143 = vmatpush.msra.mxu0 0.0
    %144 = vmatpush.msra.mxu0 0.0
    %145 = vmatpush.msra.mxu0 0.0
    %146 = vmatpush.msra.mxu0 0.0
    %147 = vmatpush.msra.mxu0 0.0
    %148 = vmatpush.msra.mxu0 0.0
    %149 = vmatpush.msra.mxu0 0.0
    %150 = vmatpush.msra.mxu0 %v125
    %151 = vmatpush.msra.mxu0 %v123
    %152 = vmatpush.msra.mxu0 %v121
    %153 = vmatpush.msra.mxu0 %v119
    %154 = vmatmul.f32.gmra.mxu0 %v136
    %v155 = vpop.f32.mrf.mxu0
    %v156 = vadd.f32 %v132, %v155
    %157 = vdwg.mxu0
    %158 = vmatpush.msra.mxu0 0.0
    %159 = vmatpush.msra.mxu0 0.0
    %160 = vmatpush.msra.mxu0 0.0
    %161 = vmatpush.msra.mxu0 0.0
    %162 = vmatpush.msra.mxu0 0.0
    %163 = vmatpush.msra.mxu0 0.0
    %164 = vmatpush.msra.mxu0 0.0
    %165 = vmatpush.msra.mxu0 0.0
    %166 = vmatpush.msra.mxu0 0.0
    %167 = vmatpush.msra.mxu0 0.0
    %168 = vmatpush.msra.mxu0 0.0
    %169 = vmatpush.msra.mxu0 0.0
    %170 = vmatpush.msra.mxu0 %v126
    %171 = vmatpush.msra.mxu0 %v124
    %172 = vmatpush.msra.mxu0 %v122
    %173 = vmatpush.msra.mxu0 %v120
    %174 = vmatmul.f32.gmra.mxu0 %v136
    %v175 = vpop.f32.mrf.mxu0
    %v176 = vadd.f32 %v133, %v175
    %177 = vdwg.mxu0
    %v178 = vmul.f32 %v156, 0.01
    %v179 = vmul.f32 %v176, 0.01
    %v180 = vmax.f32 %v156, %v178
    %v181 = vmax.f32 %v176, %v179
    %v182 = vld [vmem:[#allocation7] sm:$0xff]
    %v183 = vld [vmem:[#allocation7 + $0x8] sm:$0xff]
    %v184 = vld [vmem:[#allocation7 + $0x10] sm:$0xff]
    %v185 = vld [vmem:[#allocation7 + $0x18] sm:$0xff]
    %v186 = vld [vmem:[#allocation7 + $0x20] sm:$0xff]
    %v187 = vld [vmem:[#allocation7 + $0x28] sm:$0xff]
    %v188 = vld [vmem:[#allocation7 + $0x30] sm:$0xff]
    %v189 = vld [vmem:[#allocation7 + $0x38] sm:$0xff]
    %v190 = vld [vmem:[#allocation7 + $0x40] sm:$0xff]
    %v191 = vld [vmem:[#allocation7 + $0x48] sm:$0xff]
    %v192 = vld [vmem:[#allocation7 + $0x50] sm:$0xff]
    %v193 = vld [vmem:[#allocation7 + $0x58] sm:$0xff]
    %v194 = vld [vmem:[#allocation7 + $0x60] sm:$0xff]
    %v195 = vld [vmem:[#allocation7 + $0x68] sm:$0xff]
    %v196 = vld [vmem:[#allocation7 + $0x70] sm:$0xff]
    %v197 = vld [vmem:[#allocation7 + $0x78] sm:$0xff]
    %v198 = vld [vmem:[#allocation7 + $0x80] sm:$0xff]
    %v199 = vld [vmem:[#allocation7 + $0x88] sm:$0xff]
    %v200 = vld [vmem:[#allocation7 + $0x90] sm:$0xff]
    %v201 = vld [vmem:[#allocation7 + $0x98] sm:$0xff]
    %v202 = vld [vmem:[#allocation7 + $0xa0] sm:$0xff]
    %v203 = vld [vmem:[#allocation7 + $0xa8] sm:$0xff]
    %v204 = vld [vmem:[#allocation7 + $0xb0] sm:$0xff]
    %v205 = vld [vmem:[#allocation7 + $0xb8] sm:$0xff]
    %v206 = vld [vmem:[#allocation7 + $0xc0] sm:$0xff]
    %v207 = vld [vmem:[#allocation7 + $0xc8] sm:$0xff]
    %v208 = vld [vmem:[#allocation7 + $0xd0] sm:$0xff]
    %v209 = vld [vmem:[#allocation7 + $0xd8] sm:$0xff]
    %v210 = vld [vmem:[#allocation7 + $0xe0] sm:$0xff]
    %v211 = vld [vmem:[#allocation7 + $0xe8] sm:$0xff]
    %v212 = vld [vmem:[#allocation7 + $0xf0] sm:$0xff]
    %v213 = vld [vmem:[#allocation7 + $0xf8] sm:$0xff]
    %v214 = vperm.slane %v118, 1
    %215 = vmatpush.msra.mxu0 %v197
    %216 = vmatpush.msra.mxu0 %v196
    %217 = vmatpush.msra.mxu0 %v195
    %218 = vmatpush.msra.mxu0 %v194
    %219 = vmatpush.msra.mxu0 %v193
    %220 = vmatpush.msra.mxu0 %v192
    %221 = vmatpush.msra.mxu0 %v191
    %222 = vmatpush.msra.mxu0 %v190
    %223 = vmatpush.msra.mxu0 %v189
    %224 = vmatpush.msra.mxu0 %v188
    %225 = vmatpush.msra.mxu0 %v187
    %226 = vmatpush.msra.mxu0 %v186
    %227 = vmatpush.msra.mxu0 %v185
    %228 = vmatpush.msra.mxu0 %v184
    %229 = vmatpush.msra.mxu0 %v183
    %230 = vmatpush.msra.mxu0 %v182
    %231 = vmatmul.f32.gmra.mxu0 %v180
    %v232 = vpop.f32.mrf.mxu0
    %v233 = vadd.f32 %v214, %v232
    %234 = vdwg.mxu0
    %235 = vmatpush.msra.mxu0 %v213
    %236 = vmatpush.msra.mxu0 %v212
    %237 = vmatpush.msra.mxu0 %v211
    %238 = vmatpush.msra.mxu0 %v210
    %239 = vmatpush.msra.mxu0 %v209
    %240 = vmatpush.msra.mxu0 %v208
    %241 = vmatpush.msra.mxu0 %v207
    %242 = vmatpush.msra.mxu0 %v206
    %243 = vmatpush.msra.mxu0 %v205
    %244 = vmatpush.msra.mxu0 %v204
    %245 = vmatpush.msra.mxu0 %v203
    %246 = vmatpush.msra.mxu0 %v202
    %247 = vmatpush.msra.mxu0 %v201
    %248 = vmatpush.msra.mxu0 %v200
    %249 = vmatpush.msra.mxu0 %v199
    %250 = vmatpush.msra.mxu0 %v198
    %251 = vmatmul.f32.gmra.mxu0 %v181
    %v252 = vpop.f32.mrf.mxu0
    %v253 = vadd.f32 %v233, %v252
    %254 = vdwg.mxu0
    %v255 = vmul.f32 %v253, 0.01
    %v256 = vmax.f32 %v253, %v255
    %257 = vst [vmem:[#allocation13] sm:$0xff] %v256
    %v258 = vld [vmem:[#allocation8] sm:$0xff]
    %v259 = vld [vmem:[#allocation8 + $0x8] sm:$0xff]
    %v260 = vld [vmem:[#allocation8 + $0x10] sm:$0xff]
    %v261 = vld [vmem:[#allocation8 + $0x18] sm:$0xff]
    %v262 = vld [vmem:[#allocation8 + $0x20] sm:$0xff]
    %v263 = vld [vmem:[#allocation8 + $0x28] sm:$0xff]
    %v264 = vld [vmem:[#allocation8 + $0x30] sm:$0xff]
    %v265 = vld [vmem:[#allocation8 + $0x38] sm:$0xff]
    %v266 = vld [vmem:[#allocation8 + $0x40] sm:$0xff]
    %v267 = vld [vmem:[#allocation8 + $0x48] sm:$0xff]
    %v268 = vld [vmem:[#allocation8 + $0x50] sm:$0xff]
    %v269 = vld [vmem:[#allocation8 + $0x58] sm:$0xff]
    %v270 = vld [vmem:[#allocation8 + $0x60] sm:$0xff]
    %v271 = vld [vmem:[#allocation8 + $0x68] sm:$0xff]
    %v272 = vld [vmem:[#allocation8 + $0x70] sm:$0xff]
    %v273 = vld [vmem:[#allocation8 + $0x78] sm:$0xff]
    %v274 = vperm.slane %v118, 2
    %275 = vmatpush.msra.mxu0 %v273
    %276 = vmatpush.msra.mxu0 %v272
    %277 = vmatpush.msra.mxu0 %v271
    %278 = vmatpush.msra.mxu0 %v270
    %279 = vmatpush.msra.mxu0 %v269
    %280 = vmatpush.msra.mxu0 %v268
    %281 = vmatpush.msra.mxu0 %v267
    %282 = vmatpush.msra.mxu0 %v266
    %283 = vmatpush.msra.mxu0 %v265
    %284 = vmatpush.msra.mxu0 %v264
    %285 = vmatpush.msra.mxu0 %v263
    %286 = vmatpush.msra.mxu0 %v262
    %287 = vmatpush.msra.mxu0 %v261
    %288 = vmatpush.msra.mxu0 %v260
    %289 = vmatpush.msra.mxu0 %v259
    %290 = vmatpush.msra.mxu0 %v258
    %291 = vmatmul.f32.gmra.mxu0 %v256
    %v292 = vpop.f32.mrf.mxu0
    %v293 = vadd.f32 %v274, %v292
    %294 = vdwg.mxu0
    %v295 = vmul.f32 %v293, 0.01
    %v296 = vmax.f32 %v293, %v295
    %v297 = vld [vmem:[#allocation10] sm:$0xff]
    %v298 = vld [vmem:[#allocation10 + $0x8] sm:$0xff]
    %v299 = vld [vmem:[#allocation10 + $0x10] sm:$0xff]
    %v300 = vld [vmem:[#allocation10 + $0x18] sm:$0xff]
    %v301 = vld [vmem:[#allocation10 + $0x20] sm:$0xff]
    %v302 = vld [vmem:[#allocation10 + $0x28] sm:$0xff]
    %v303 = vld [vmem:[#allocation10 + $0x30] sm:$0xff]
    %v304 = vld [vmem:[#allocation10 + $0x38] sm:$0xff]
    %v305 = vld [vmem:[#allocation10 + $0x40] sm:$0xff]
    %v306 = vld [vmem:[#allocation10 + $0x48] sm:$0xff]
    %v307 = vld [vmem:[#allocation10 + $0x50] sm:$0xff]
    %v308 = vld [vmem:[#allocation10 + $0x58] sm:$0xff]
    %v309 = vld [vmem:[#allocation10 + $0x60] sm:$0xff]
    %v310 = vld [vmem:[#allocation10 + $0x68] sm:$0xff]
    %v311 = vld [vmem:[#allocation10 + $0x70] sm:$0xff]
    %v312 = vld [vmem:[#allocation10 + $0x78] sm:$0xff]
    %v313 = vperm.slane %v118, 3
    %314 = vmatpush.msra.mxu0 %v312
    %315 = vmatpush.msra.mxu0 %v311
    %316 = vmatpush.msra.mxu0 %v310
    %317 = vmatpush.msra.mxu0 %v309
    %318 = vmatpush.msra.mxu0 %v308
    %319 = vmatpush.msra.mxu0 %v307
    %320 = vmatpush.msra.mxu0 %v306
    %321 = vmatpush.msra.mxu0 %v305
    %322 = vmatpush.msra.mxu0 %v304
    %323 = vmatpush.msra.mxu0 %v303
    %324 = vmatpush.msra.mxu0 %v302
    %325 = vmatpush.msra.mxu0 %v301
    %326 = vmatpush.msra.mxu0 %v300
    %327 = vmatpush.msra.mxu0 %v299
    %328 = vmatpush.msra.mxu0 %v298
    %329 = vmatpush.msra.mxu0 %v297
    %330 = vmatmul.f32.gmra.mxu0 %v296
    %v331 = vpop.f32.mrf.mxu0
    %v332 = vadd.f32 %v313, %v331
    %333 = vdwg.mxu0
    %334 = vst [vmem:[#allocation14] sm:$0xff] %v332
    // Predicated region
    $region50: #{fc_forward.1} parent=1 // pred_check
      _
    $region51: #{fc_forward.1} parent=1 // pred_check_branch
      %336 = sbr.rel (0) target = $region53
    $region52: #{fc_forward.1} parent=1 // pred_region
      %338 = vsyncadd [#allocation4], 0
      %s340 = sshll.u32 [#allocation13], 4
      %s341 = int_to_ptr.vmem [resolvable:$true] %s340
      %s342 = sshll.u32 %s6, 4
      %s343 = int_to_ptr.hbm [resolvable:$true] %s342
      %345 = dma.vmem_to_hbm [thread:$0]  %s341, 128, %s343, [#allocation4]
    $region53: #{fc_forward.1} parent=1 // pred_fallthru
      _
    // Predicated region
    $region54: #{fc_forward.1} parent=1 // pred_check
      _
    $region55: #{fc_forward.1} parent=1 // pred_check_branch
      %347 = sbr.rel (0) target = $region57
    $region56: #{fc_forward.1} parent=1 // pred_region
      %349 = vsyncadd [#allocation15], 0
      %s351 = sshll.u32 [#allocation14], 4
      %s352 = int_to_ptr.vmem [resolvable:$true] %s351
      %s353 = sshll.u32 %s7, 4
      %s354 = int_to_ptr.hbm [resolvable:$true] %s353
      %356 = dma.vmem_to_hbm [thread:$0]  %s352, 128, %s354, [#allocation15]
    $region57: #{fc_forward.1} parent=1 // pred_fallthru
      _
    // Predicated region
    $region58: #{fc_forward.1} parent=1 // pred_check
      _
    $region59: #{fc_forward.1} parent=1 // pred_check_branch
      %358 = sbr.rel (0) target = $region61
    $region60: #{fc_forward.1} parent=1 // pred_region
      %360 = dma.done [#allocation4], 128
    $region61: #{fc_forward.1} parent=1 // pred_fallthru
      _
    // Predicated region
    $region62: #{fc_forward.1} parent=1 // pred_check
      _
    $region63: #{fc_forward.1} parent=1 // pred_check_branch
      %362 = sbr.rel (0) target = $region65
    $region64: #{fc_forward.1} parent=1 // pred_region
      %364 = dma.done [#allocation15], 128
    $region65: #{fc_forward.1} parent=1 // pred_fallthru
      _
    %365 = vsyncpa [#allocation3], 1
    %366 = vsyncpa [#allocation6], 1
    %367 = vsyncpa [#allocation9], 1
    %368 = vsyncpa [#allocation12], 1
    %369 = vsyncpa [#allocation4], 1
    %370 = vsyncpa [#allocation15], 1

</llo_original>
